<compile_context>
chip_gen: v7x
topology: tpu7x:2x2x1
jax: 0.10.0
libtpu: 0.0.40
codegen_flags: <defaults>
</compile_context>

<pallas_src>
import functools
import math
from typing import NamedTuple, Optional

import jax
import jax.numpy as jnp
from jax.experimental import pallas as pl
from jax.experimental.pallas import tpu as pltpu


# ---------------------------------------------------------------------------
# Kernels
# ---------------------------------------------------------------------------

def _kernel_single_k(x_ref, w_ref, o_ref, *, inv_sqrt_d):
    """Whole K in one block: no reduction axis, no accumulator, no revisits."""
    o_ref[...] = (
        jnp.dot(x_ref[...], w_ref[...], preferred_element_type=jnp.float32)
        * inv_sqrt_d
    ).astype(o_ref.dtype)


def _kernel_acc_in_out(x_ref, w_ref, o_ref, *, inv_sqrt_d):
    """Multi-K, f32 output: accumulate directly into the K-resident out block."""
    k = pl.program_id(2)

    @pl.when(k == 0)
    def _():
        o_ref[...] = jnp.zeros_like(o_ref)

    o_ref[...] += jnp.dot(x_ref[...], w_ref[...],
                          preferred_element_type=jnp.float32)

    @pl.when(k == pl.num_programs(2) - 1)
    def _():
        o_ref[...] = (o_ref[...] * inv_sqrt_d).astype(o_ref.dtype)


def _kernel_acc_scratch(x_ref, w_ref, o_ref, acc_ref, *, inv_sqrt_d):
    """Multi-K, non-f32 output: f32 scratch accumulator, scale+cast at the end."""
    k = pl.program_id(2)

    @pl.when(k == 0)
    def _():
        acc_ref[...] = jnp.zeros_like(acc_ref)

    acc_ref[...] += jnp.dot(x_ref[...], w_ref[...],
                            preferred_element_type=jnp.float32)

    @pl.when(k == pl.num_programs(2) - 1)
    def _():
        o_ref[...] = (acc_ref[...] * inv_sqrt_d).astype(o_ref.dtype)


# ---------------------------------------------------------------------------
# Planning (generation-aware tiling) + weight prep (hoisted out of per-call)
# ---------------------------------------------------------------------------

def _round_up(x, m):
    return (x + m - 1) // m * m


def _default_vmem_budget():
    """Per-generation VMEM budget: half of physical per-core VMEM, <=64 MiB.

    v5e/v6e (128 MiB) -> 64 MiB; v7x (64 MiB) -> 32 MiB. Leaves plenty of
    headroom for internal scratch and the pipeline's double buffers.
    """
    try:
        cap = int(pltpu.get_tpu_info().vmem_capacity_bytes)
    except Exception:
        cap = 64 * 1024 * 1024
    return min(cap // 2, 64 * 1024 * 1024)


class LinearPlan(NamedTuple):
    b: int
    d: int
    c: int
    b_pad: int
    d_pad: int
    c_pad: int
    tm: int
    tn: int
    tk: int
    k_tiles: int
    compute_dtype: jnp.dtype
    out_dtype: jnp.dtype
    vmem_limit_bytes: int
    inv_sqrt_d: float


def plan_linear(batch, input_dim, n_classes, *, x_dtype=jnp.float32,
                compute_dtype=None, vmem_budget_bytes: Optional[int] = None):
    out_dtype = jnp.dtype(x_dtype)
    cdt = jnp.dtype(compute_dtype) if compute_dtype is not None else out_dtype
    cb = cdt.itemsize
    ob = out_dtype.itemsize
    sub = 8 if (cb >= 4 and ob >= 4) else 16        # sublane granularity

    vmem_limit = _default_vmem_budget()
    budget = vmem_budget_bytes if vmem_budget_bytes is not None else vmem_limit

    d_base = _round_up(input_dim, 128)

    # --- N tiling: keep tiny C unpadded (block last dim == full dim is legal);
    #     avoids inflating W HBM reads ~12.8x when C=10.
    if n_classes <= 128:
        tn, c_pad = n_classes, n_classes
    else:
        tn = 256 if n_classes >= 256 else 128
        c_pad = _round_up(n_classes, tn)

    # --- M tiling: choose the tile first, then pad B up to it.
    b_req = _round_up(batch, sub)
    tm = min(512, b_req)
    b_pad = _round_up(b_req, tm)

    def usage(tm_, tk_, tn_, scratch):
        # double-buffered inputs and output + optional f32 accumulator
        u = 2 * tm_ * tk_ * cb + 2 * tk_ * tn_ * cb + 2 * tm_ * tn_ * ob
        if scratch:
            u += tm_ * tn_ * 4
        return u

    # Shrink tm only if even the smallest K tile would not fit the budget.
    while tm > sub and usage(tm, 128, tn, True) > budget:
        tm = max(sub, _round_up(tm // 2, sub))
        b_pad = _round_up(b_req, tm)

    # --- K tiling: small-problem fast path (single K step) if the whole K fits.
    if usage(tm, d_base, tn, False) <= budget:
        tk, d_pad, k_tiles = d_base, d_base, 1
    else:
        need_scratch = out_dtype != jnp.dtype(jnp.float32)
        best = None
        for cand in (2048, 1024, 512, 256, 128):
            if cand > d_base or usage(tm, cand, tn, need_scratch) > budget:
                continue
            padded = _round_up(d_base, cand)
            key = (padded, -cand)              # minimize K padding, prefer big tk
            if best is None or key < best[0]:
                best = (key, cand)
        tk = best[1] if best is not None else 128
        d_pad = _round_up(d_base, tk)
        k_tiles = d_pad // tk

    # --- v7x megacore: if M collapsed to one tile, try to give N >= 2 tiles.
    if (b_pad // tm == 1 and c_pad // tn == 1
            and tn >= 256 and (tn // 2) % 128 == 0):
        tn //= 2

    return LinearPlan(batch, input_dim, n_classes, b_pad, d_pad, c_pad,
                      tm, tn, tk, k_tiles, cdt, out_dtype, vmem_limit,
                      1.0 / math.sqrt(input_dim))


def prepare_weight(w, plan: LinearPlan):
    """Pad (zero K padding is required for correctness) and cast W ONCE."""
    d, c = w.shape
    assert (d, c) == (plan.d, plan.c)
    wp = jnp.pad(w, ((0, plan.d_pad - d), (0, plan.c_pad - c)))
    return wp.astype(plan.compute_dtype)


# ---------------------------------------------------------------------------
# Forward
# ---------------------------------------------------------------------------

def linear_forward(x, w_prepped, plan: LinearPlan):
    b = x.shape[0]
    x2d = x.reshape(b, -1)                       # same as torch .view(B, -1)
    assert x2d.shape[1] == plan.d and b == plan.b

    # Per-call pad/cast of x only (weight prep is hoisted).
    # NOTE: could be fused into the kernel's input pipeline with
    # CompilerParams(allow_input_fusion=...) to save one HBM pass over X.
    xp = jnp.pad(x2d.astype(plan.compute_dtype),
                 ((0, plan.b_pad - b), (0, plan.d_pad - plan.d)))

    m_t = plan.b_pad // plan.tm
    n_t = plan.c_pad // plan.tn

    cost = pl.CostEstimate(
        flops=2 * plan.b_pad * plan.c_pad * plan.d_pad,
        transcendentals=0,
        bytes_accessed=(xp.size * xp.dtype.itemsize
                        + w_prepped.size * w_prepped.dtype.itemsize
                        + plan.b_pad * plan.c_pad * plan.out_dtype.itemsize),
    )

    if plan.k_tiles == 1:
        kernel = functools.partial(_kernel_single_k, inv_sqrt_d=plan.inv_sqrt_d)
        out_padded = pl.pallas_call(
            kernel,
            out_shape=jax.ShapeDtypeStruct((plan.b_pad, plan.c_pad),
                                           plan.out_dtype),
            grid=(m_t, n_t),
            in_specs=[
                pl.BlockSpec((plan.tm, plan.tk), lambda i, j: (i, 0)),
                pl.BlockSpec((plan.tk, plan.tn), lambda i, j: (0, j)),
            ],
            out_specs=pl.BlockSpec((plan.tm, plan.tn), lambda i, j: (i, j)),
            compiler_params=pltpu.CompilerParams(
                dimension_semantics=("parallel", "parallel"),
                vmem_limit_bytes=plan.vmem_limit_bytes,
            ),
            cost_estimate=cost,
        )(xp, w_prepped)
    else:
        f32_out = plan.out_dtype == jnp.dtype(jnp.float32)
        if f32_out:
            kernel = functools.partial(_kernel_acc_in_out,
                                       inv_sqrt_d=plan.inv_sqrt_d)
            scratch = []
        else:
            kernel = functools.partial(_kernel_acc_scratch,
                                       inv_sqrt_d=plan.inv_sqrt_d)
            scratch = [pltpu.VMEM((plan.tm, plan.tn), jnp.float32)]
        out_padded = pl.pallas_call(
            kernel,
            out_shape=jax.ShapeDtypeStruct((plan.b_pad, plan.c_pad),
                                           plan.out_dtype),
            grid=(m_t, n_t, plan.k_tiles),
            in_specs=[
                pl.BlockSpec((plan.tm, plan.tk), lambda i, j, k: (i, k)),
                pl.BlockSpec((plan.tk, plan.tn), lambda i, j, k: (k, j)),
            ],
            out_specs=pl.BlockSpec((plan.tm, plan.tn), lambda i, j, k: (i, j)),
            scratch_shapes=scratch,
            compiler_params=pltpu.CompilerParams(
                dimension_semantics=("parallel", "parallel", "arbitrary"),
                vmem_limit_bytes=plan.vmem_limit_bytes,
            ),
            cost_estimate=cost,
        )(xp, w_prepped)

    return out_padded[:b, :plan.c]


def linear_apply(x, w, *, compute_dtype=None, vmem_budget_bytes=None):
    """One-shot convenience wrapper (plans + preps W per call)."""
    b = x.shape[0]
    d, c = w.shape
    plan = plan_linear(b, d, c, x_dtype=x.dtype, compute_dtype=compute_dtype,
                       vmem_budget_bytes=vmem_budget_bytes)
    return linear_forward(x, prepare_weight(w, plan), plan)


# ---------------------------------------------------------------------------
# Demo / correctness check
# ---------------------------------------------------------------------------

if __name__ == "__main__":
    key = jax.random.PRNGKey(0)
    kx, kw = jax.random.split(key)

    # Shapes consistent with the module: x (B, C, H, W) flattened to (B, D).
    B, C, H, W = 2, 4, 16, 16
    input_dim = C * H * W          # 1024
    n_classes = 10

    x = jax.random.normal(kx, (B, C, H, W), dtype=jnp.float32)
    # Deterministic weight init mirroring torch's w.normal_().
    w = jax.random.normal(kw, (input_dim, n_classes), dtype=jnp.float32)

    ref = (x.reshape(B, -1) @ w) / math.sqrt(input_dim)

    # 1) f32 path, hoisted weight prep; whole K fits VMEM -> single-K fast path.
    plan = plan_linear(B, input_dim, n_classes, x_dtype=x.dtype)
    w_prepped = prepare_weight(w, plan)
    out = jax.block_until_ready(linear_forward(x, w_prepped, plan))
    assert out.shape == (B, n_classes)
    assert plan.k_tiles == 1
    assert jnp.allclose(out, ref, atol=1e-5, rtol=1e-5)

    # 2) Force the K-reduction path (f32 output accumulated directly in o_ref)
    #    by shrinking the planning budget.
    out_kt = jax.block_until_ready(
        linear_apply(x, w, vmem_budget_bytes=100 * 1024))
    assert out_kt.shape == (B, n_classes)
    assert jnp.allclose(out_kt, ref, atol=1e-5, rtol=1e-5)

    # 3) bf16 MXU operands + bf16 output + forced K reduction
    #    (exercises the scratch-accumulator kernel). Loose tolerance.
    out_bf16 = jax.block_until_ready(
        linear_apply(x.astype(jnp.bfloat16), w,
                     compute_dtype=jnp.bfloat16,
                     vmem_budget_bytes=64 * 1024))
    assert out_bf16.shape == (B, n_classes)
    assert out_bf16.dtype == jnp.bfloat16
    assert jnp.allclose(out_bf16.astype(jnp.float32), ref, atol=0.5, rtol=5e-2)

    print("KERNEL_OK")
</pallas_src>

<mosaic_0001>
module attributes {stable_mosaic.version = 11 : i64} {
  func.func @_kernel_single_k(%arg0: i32, %arg1: i32, %arg2: memref<8x1024xf32, #tpu.memory_space<vmem>>, %arg3: memref<1024x10xf32, #tpu.memory_space<vmem>>, %arg4: memref<8x10xf32, #tpu.memory_space<vmem>>) attributes {dimension_semantics = [#tpu.dimension_semantics<parallel>, #tpu.dimension_semantics<parallel>], iteration_bounds = array<i64: 1, 1>, scalar_prefetch = 0 : i64, scratch_operands = 0 : i64, tpu.core_type = #tpu.core_type<tc>, window_params = [{transform_indices = @transform_0, window_bounds = array<i64: 8, 1024>}, {transform_indices = @transform_1, window_bounds = array<i64: 1024, 10>}, {transform_indices = @transform_2, window_bounds = array<i64: 8, 10>}]} {
    %c0 = arith.constant 0 : index
    %c0_0 = arith.constant 0 : index
    %0 = vector.load %arg2[%c0, %c0_0] : memref<8x1024xf32, #tpu.memory_space<vmem>>, vector<8x1024xf32>
    %c0_1 = arith.constant 0 : index
    %c0_2 = arith.constant 0 : index
    %1 = vector.load %arg3[%c0_1, %c0_2] : memref<1024x10xf32, #tpu.memory_space<vmem>>, vector<1024x10xf32>
    %cst = arith.constant dense<0.000000e+00> : vector<8x10xf32>
    %2 = tpu.matmul %0, %1, %cst {dimension_numbers = #tpu.dot_dimension_numbers<[1], [0], [0], [1], [0, 0, 1, 1], [], []>} : vector<8x1024xf32>, vector<1024x10xf32>, vector<8x10xf32> -> vector<8x10xf32>
    %cst_3 = arith.constant 3.125000e-02 : f32
    %3 = vector.broadcast %cst_3 : f32 to vector<8x10xf32>
    %4 = arith.mulf %2, %3 : vector<8x10xf32>
    %c0_4 = arith.constant 0 : index
    %c0_5 = arith.constant 0 : index
    %5 = vector.load %arg4[%c0_4, %c0_5] : memref<8x10xf32, #tpu.memory_space<vmem>>, vector<8x10xf32>
    tpu.vector_store %arg4[%c0_4, %c0_5], %4 {strides = array<i32>} : memref<8x10xf32, #tpu.memory_space<vmem>>, vector<8x10xf32>,
    return
  }
  func.func @transform_0(%arg0: i32, %arg1: i32) -> (i32, i32) {
    %c0_i32 = arith.constant 0 : i32
    %c0_i32_0 = arith.constant 0 : i32
    return %arg0, %c0_i32 : i32, i32
  }
  func.func @transform_1(%arg0: i32, %arg1: i32) -> (i32, i32) {
    %c0_i32 = arith.constant 0 : i32
    %c0_i32_0 = arith.constant 0 : i32
    return %c0_i32, %arg1 : i32, i32
  }
  func.func @transform_2(%arg0: i32, %arg1: i32) -> (i32, i32) {
    %c0_i32 = arith.constant 0 : i32
    return %arg0, %arg1 : i32, i32
  }
}

</mosaic_0001>

<llo_original>
// kernel: tpu_custom_call.1
$region0: #{tpu_custom_call.1}
  #allocation0 [shape = 'u32[]', space=smem, size = 0x4, offset = 0x4, fixed_abs, tag = 'smem constant byte address 0x4 - core index']
  #allocation1 [shape = 'u32[144,128]{1,0:T(1,128)}', space=vmem, size = 0x12000, scoped, tag = 'internal scratch']
  %s0 = inlined_call_operand.vmem [shape: f32[8,1024], index: 0, kind: input, shape index: {}]
  %s1 = inlined_call_operand.vmem [shape: f32[1024,10], index: 1, kind: input, shape index: {}]
  %s2 = inlined_call_operand.hbm [shape: f32[8,10], index: 2, kind: output, shape index: {}]
  %s3 = sld [smem:[#allocation0]]
  $region18: #{tpu_custom_call.1} parent=0
    _
  %s5 = ssub.s32 1, %s3
  %s6 = scalar_select 0, %s5, %s3
  $region1: #{tpu_custom_call.1} parent=0
    #allocation2 [shape = 'u8[4096]{0}', space=vmem, size = 0x1000, scoped, tag = 'output window, operand 0, single buffered']
    #allocation3 [shape = 's32[1]{0}', space=sflag, size = 0x4, scoped, tag = 'scoped memory for tpu_custom_call.1']
    %7 = vsyncpa [#allocation3], 0
    // Predicated region
    $region2: #{tpu_custom_call.1} parent=1 // pred_check
      _
    $region3: #{tpu_custom_call.1} parent=1 // pred_check_branch
      %9 = sbr.rel (0) target = $region5
    $region4: #{tpu_custom_call.1} parent=1 // pred_region
      _
    $region5: #{tpu_custom_call.1} parent=1 // pred_fallthru
      _
    // Predicated region
    $region6: #{tpu_custom_call.1} parent=1 // pred_check
      _
    $region7: #{tpu_custom_call.1} parent=1 // pred_check_branch
      %11 = sbr.rel (0) target = $region9
    $region8: #{tpu_custom_call.1} parent=1 // pred_region
      _
    $region9: #{tpu_custom_call.1} parent=1 // pred_fallthru
      _
    %v12 = vld [vmem:[%s0] sm:$0xff]
    %v13 = vld [vmem:[%s0 + $0x8] sm:$0xff]
    %v14 = vld [vmem:[%s0 + $0x10] sm:$0xff]
    %v15 = vld [vmem:[%s0 + $0x18] sm:$0xff]
    %v16 = vld [vmem:[%s0 + $0x20] sm:$0xff]
    %v17 = vld [vmem:[%s0 + $0x28] sm:$0xff]
    %v18 = vld [vmem:[%s0 + $0x30] sm:$0xff]
    %v19 = vld [vmem:[%s0 + $0x38] sm:$0xff]
    %v20 = vld [vmem:[%s1] sm:$0xff]
    %v21 = vld [vmem:[%s1 + $0x8] sm:$0xff]
    %v22 = vld [vmem:[%s1 + $0x10] sm:$0xff]
    %v23 = vld [vmem:[%s1 + $0x18] sm:$0xff]
    %v24 = vld [vmem:[%s1 + $0x20] sm:$0xff]
    %v25 = vld [vmem:[%s1 + $0x28] sm:$0xff]
    %v26 = vld [vmem:[%s1 + $0x30] sm:$0xff]
    %v27 = vld [vmem:[%s1 + $0x38] sm:$0xff]
    %v28 = vld [vmem:[%s1 + $0x40] sm:$0xff]
    %v29 = vld [vmem:[%s1 + $0x48] sm:$0xff]
    %v30 = vld [vmem:[%s1 + $0x50] sm:$0xff]
    %v31 = vld [vmem:[%s1 + $0x58] sm:$0xff]
    %v32 = vld [vmem:[%s1 + $0x60] sm:$0xff]
    %v33 = vld [vmem:[%s1 + $0x68] sm:$0xff]
    %v34 = vld [vmem:[%s1 + $0x70] sm:$0xff]
    %v35 = vld [vmem:[%s1 + $0x78] sm:$0xff]
    %v36 = vld [vmem:[%s1 + $0x80] sm:$0xff]
    %v37 = vld [vmem:[%s1 + $0x88] sm:$0xff]
    %v38 = vld [vmem:[%s1 + $0x90] sm:$0xff]
    %v39 = vld [vmem:[%s1 + $0x98] sm:$0xff]
    %v40 = vld [vmem:[%s1 + $0xa0] sm:$0xff]
    %v41 = vld [vmem:[%s1 + $0xa8] sm:$0xff]
    %v42 = vld [vmem:[%s1 + $0xb0] sm:$0xff]
    %v43 = vld [vmem:[%s1 + $0xb8] sm:$0xff]
    %v44 = vld [vmem:[%s1 + $0xc0] sm:$0xff]
    %v45 = vld [vmem:[%s1 + $0xc8] sm:$0xff]
    %v46 = vld [vmem:[%s1 + $0xd0] sm:$0xff]
    %v47 = vld [vmem:[%s1 + $0xd8] sm:$0xff]
    %v48 = vld [vmem:[%s1 + $0xe0] sm:$0xff]
    %v49 = vld [vmem:[%s1 + $0xe8] sm:$0xff]
    %v50 = vld [vmem:[%s1 + $0xf0] sm:$0xff]
    %v51 = vld [vmem:[%s1 + $0xf8] sm:$0xff]
    %v52 = vld [vmem:[%s1 + $0x100] sm:$0xff]
    %v53 = vld [vmem:[%s1 + $0x108] sm:$0xff]
    %v54 = vld [vmem:[%s1 + $0x110] sm:$0xff]
    %v55 = vld [vmem:[%s1 + $0x118] sm:$0xff]
    %v56 = vld [vmem:[%s1 + $0x120] sm:$0xff]
    %v57 = vld [vmem:[%s1 + $0x128] sm:$0xff]
    %v58 = vld [vmem:[%s1 + $0x130] sm:$0xff]
    %v59 = vld [vmem:[%s1 + $0x138] sm:$0xff]
    %v60 = vld [vmem:[%s1 + $0x140] sm:$0xff]
    %v61 = vld [vmem:[%s1 + $0x148] sm:$0xff]
    %v62 = vld [vmem:[%s1 + $0x150] sm:$0xff]
    %v63 = vld [vmem:[%s1 + $0x158] sm:$0xff]
    %v64 = vld [vmem:[%s1 + $0x160] sm:$0xff]
    %v65 = vld [vmem:[%s1 + $0x168] sm:$0xff]
    %v66 = vld [vmem:[%s1 + $0x170] sm:$0xff]
    %v67 = vld [vmem:[%s1 + $0x178] sm:$0xff]
    %v68 = vld [vmem:[%s1 + $0x180] sm:$0xff]
    %v69 = vld [vmem:[%s1 + $0x188] sm:$0xff]
    %v70 = vld [vmem:[%s1 + $0x190] sm:$0xff]
    %v71 = vld [vmem:[%s1 + $0x198] sm:$0xff]
    %v72 = vld [vmem:[%s1 + $0x1a0] sm:$0xff]
    %v73 = vld [vmem:[%s1 + $0x1a8] sm:$0xff]
    %v74 = vld [vmem:[%s1 + $0x1b0] sm:$0xff]
    %v75 = vld [vmem:[%s1 + $0x1b8] sm:$0xff]
    %v76 = vld [vmem:[%s1 + $0x1c0] sm:$0xff]
    %v77 = vld [vmem:[%s1 + $0x1c8] sm:$0xff]
    %v78 = vld [vmem:[%s1 + $0x1d0] sm:$0xff]
    %v79 = vld [vmem:[%s1 + $0x1d8] sm:$0xff]
    %v80 = vld [vmem:[%s1 + $0x1e0] sm:$0xff]
    %v81 = vld [vmem:[%s1 + $0x1e8] sm:$0xff]
    %v82 = vld [vmem:[%s1 + $0x1f0] sm:$0xff]
    %v83 = vld [vmem:[%s1 + $0x1f8] sm:$0xff]
    %v84 = vld [vmem:[%s1 + $0x200] sm:$0xff]
    %v85 = vld [vmem:[%s1 + $0x208] sm:$0xff]
    %v86 = vld [vmem:[%s1 + $0x210] sm:$0xff]
    %v87 = vld [vmem:[%s1 + $0x218] sm:$0xff]
    %v88 = vld [vmem:[%s1 + $0x220] sm:$0xff]
    %v89 = vld [vmem:[%s1 + $0x228] sm:$0xff]
    %v90 = vld [vmem:[%s1 + $0x230] sm:$0xff]
    %v91 = vld [vmem:[%s1 + $0x238] sm:$0xff]
    %v92 = vld [vmem:[%s1 + $0x240] sm:$0xff]
    %v93 = vld [vmem:[%s1 + $0x248] sm:$0xff]
    %v94 = vld [vmem:[%s1 + $0x250] sm:$0xff]
    %v95 = vld [vmem:[%s1 + $0x258] sm:$0xff]
    %v96 = vld [vmem:[%s1 + $0x260] sm:$0xff]
    %v97 = vld [vmem:[%s1 + $0x268] sm:$0xff]
    %v98 = vld [vmem:[%s1 + $0x270] sm:$0xff]
    %v99 = vld [vmem:[%s1 + $0x278] sm:$0xff]
    %v100 = vld [vmem:[%s1 + $0x280] sm:$0xff]
    %v101 = vld [vmem:[%s1 + $0x288] sm:$0xff]
    %v102 = vld [vmem:[%s1 + $0x290] sm:$0xff]
    %v103 = vld [vmem:[%s1 + $0x298] sm:$0xff]
    %v104 = vld [vmem:[%s1 + $0x2a0] sm:$0xff]
    %v105 = vld [vmem:[%s1 + $0x2a8] sm:$0xff]
    %v106 = vld [vmem:[%s1 + $0x2b0] sm:$0xff]
    %v107 = vld [vmem:[%s1 + $0x2b8] sm:$0xff]
    %v108 = vld [vmem:[%s1 + $0x2c0] sm:$0xff]
    %v109 = vld [vmem:[%s1 + $0x2c8] sm:$0xff]
    %v110 = vld [vmem:[%s1 + $0x2d0] sm:$0xff]
    %v111 = vld [vmem:[%s1 + $0x2d8] sm:$0xff]
    %v112 = vld [vmem:[%s1 + $0x2e0] sm:$0xff]
    %v113 = vld [vmem:[%s1 + $0x2e8] sm:$0xff]
    %v114 = vld [vmem:[%s1 + $0x2f0] sm:$0xff]
    %v115 = vld [vmem:[%s1 + $0x2f8] sm:$0xff]
    %v116 = vld [vmem:[%s1 + $0x300] sm:$0xff]
    %v117 = vld [vmem:[%s1 + $0x308] sm:$0xff]
    %v118 = vld [vmem:[%s1 + $0x310] sm:$0xff]
    %v119 = vld [vmem:[%s1 + $0x318] sm:$0xff]
    %v120 = vld [vmem:[%s1 + $0x320] sm:$0xff]
    %v121 = vld [vmem:[%s1 + $0x328] sm:$0xff]
    %v122 = vld [vmem:[%s1 + $0x330] sm:$0xff]
    %v123 = vld [vmem:[%s1 + $0x338] sm:$0xff]
    %v124 = vld [vmem:[%s1 + $0x340] sm:$0xff]
    %v125 = vld [vmem:[%s1 + $0x348] sm:$0xff]
    %v126 = vld [vmem:[%s1 + $0x350] sm:$0xff]
    %v127 = vld [vmem:[%s1 + $0x358] sm:$0xff]
    %v128 = vld [vmem:[%s1 + $0x360] sm:$0xff]
    %v129 = vld [vmem:[%s1 + $0x368] sm:$0xff]
    %v130 = vld [vmem:[%s1 + $0x370] sm:$0xff]
    %v131 = vld [vmem:[%s1 + $0x378] sm:$0xff]
    %v132 = vld [vmem:[%s1 + $0x380] sm:$0xff]
    %v133 = vld [vmem:[%s1 + $0x388] sm:$0xff]
    %v134 = vld [vmem:[%s1 + $0x390] sm:$0xff]
    %v135 = vld [vmem:[%s1 + $0x398] sm:$0xff]
    %v136 = vld [vmem:[%s1 + $0x3a0] sm:$0xff]
    %v137 = vld [vmem:[%s1 + $0x3a8] sm:$0xff]
    %v138 = vld [vmem:[%s1 + $0x3b0] sm:$0xff]
    %v139 = vld [vmem:[%s1 + $0x3b8] sm:$0xff]
    %v140 = vld [vmem:[%s1 + $0x3c0] sm:$0xff]
    %v141 = vld [vmem:[%s1 + $0x3c8] sm:$0xff]
    %v142 = vld [vmem:[%s1 + $0x3d0] sm:$0xff]
    %v143 = vld [vmem:[%s1 + $0x3d8] sm:$0xff]
    %v144 = vld [vmem:[%s1 + $0x3e0] sm:$0xff]
    %v145 = vld [vmem:[%s1 + $0x3e8] sm:$0xff]
    %v146 = vld [vmem:[%s1 + $0x3f0] sm:$0xff]
    %v147 = vld [vmem:[%s1 + $0x3f8] sm:$0xff]
    %148 = vmatprep.subr.mxu0 0.0
    %149 = vmatpush1.msra.mxu0 %v20
    %150 = vmatprep.subr.mxu0 0.0
    %151 = vmatpush1.msra.mxu0 %v21
    %152 = vmatprep.subr.mxu0 0.0
    %153 = vmatpush1.msra.mxu0 %v22
    %154 = vmatprep.subr.mxu0 0.0
    %155 = vmatpush1.msra.mxu0 %v23
    %156 = vmatprep.subr.mxu0 0.0
    %157 = vmatpush1.msra.mxu0 %v24
    %158 = vmatprep.subr.mxu0 0.0
    %159 = vmatpush1.msra.mxu0 %v25
    %160 = vmatprep.subr.mxu0 0.0
    %161 = vmatpush1.msra.mxu0 %v26
    %162 = vmatprep.subr.mxu0 0.0
    %163 = vmatpush1.msra.mxu0 %v27
    %164 = vmatprep.subr.mxu0 0.0
    %165 = vmatpush1.msra.mxu0 %v28
    %166 = vmatprep.subr.mxu0 0.0
    %167 = vmatpush1.msra.mxu0 %v29
    %168 = vmatprep.subr.mxu0 0.0
    %169 = vmatpush1.msra.mxu0 %v30
    %170 = vmatprep.subr.mxu0 0.0
    %171 = vmatpush1.msra.mxu0 %v31
    %172 = vmatprep.subr.mxu0 0.0
    %173 = vmatpush1.msra.mxu0 %v32
    %174 = vmatprep.subr.mxu0 0.0
    %175 = vmatpush1.msra.mxu0 %v33
    %176 = vmatprep.subr.mxu0 0.0
    %177 = vmatpush1.msra.mxu0 %v34
    %178 = vmatprep.subr.mxu0 0.0
    %179 = vmatpush1.msra.mxu0 %v35
    %180 = vmatprep.subr.mxu0 0.0
    %181 = vmatpush1.msra.mxu0 %v36
    %182 = vmatprep.subr.mxu0 0.0
    %183 = vmatpush1.msra.mxu0 %v37
    %184 = vmatprep.subr.mxu0 0.0
    %185 = vmatpush1.msra.mxu0 %v38
    %186 = vmatprep.subr.mxu0 0.0
    %187 = vmatpush1.msra.mxu0 %v39
    %188 = vmatprep.subr.mxu0 0.0
    %189 = vmatpush1.msra.mxu0 %v40
    %190 = vmatprep.subr.mxu0 0.0
    %191 = vmatpush1.msra.mxu0 %v41
    %192 = vmatprep.subr.mxu0 0.0
    %193 = vmatpush1.msra.mxu0 %v42
    %194 = vmatprep.subr.mxu0 0.0
    %195 = vmatpush1.msra.mxu0 %v43
    %196 = vmatprep.subr.mxu0 0.0
    %197 = vmatpush1.msra.mxu0 %v44
    %198 = vmatprep.subr.mxu0 0.0
    %199 = vmatpush1.msra.mxu0 %v45
    %200 = vmatprep.subr.mxu0 0.0
    %201 = vmatpush1.msra.mxu0 %v46
    %202 = vmatprep.subr.mxu0 0.0
    %203 = vmatpush1.msra.mxu0 %v47
    %204 = vmatprep.subr.mxu0 0.0
    %205 = vmatpush1.msra.mxu0 %v48
    %206 = vmatprep.subr.mxu0 0.0
    %207 = vmatpush1.msra.mxu0 %v49
    %208 = vmatprep.subr.mxu0 0.0
    %209 = vmatpush1.msra.mxu0 %v50
    %210 = vmatprep.subr.mxu0 0.0
    %211 = vmatpush1.msra.mxu0 %v51
    %212 = vmatprep.mubr.f32.mxu0 %v13
    %213 = vmatmul.mubr.f32.gmra.mrb[0].mxu0 %v12
    %v214 = vpop.f32.mrb[0].mxu0
    %v215 = vadd.f32 0.0, %v214
    %v216 = vpop.f32.mrb[0].mxu0
    %217 = vdwg.mxu0
    %218 = vmatprep.subr.mxu0 0.0
    %219 = vmatpush1.msra.mxu0 %v52
    %220 = vmatprep.subr.mxu0 0.0
    %221 = vmatpush1.msra.mxu0 %v53
    %222 = vmatprep.subr.mxu0 0.0
    %223 = vmatpush1.msra.mxu0 %v54
    %224 = vmatprep.subr.mxu0 0.0
    %225 = vmatpush1.msra.mxu0 %v55
    %226 = vmatprep.subr.mxu0 0.0
    %227 = vmatpush1.msra.mxu0 %v56
    %228 = vmatprep.subr.mxu0 0.0
    %229 = vmatpush1.msra.mxu0 %v57
    %230 = vmatprep.subr.mxu0 0.0
    %231 = vmatpush1.msra.mxu0 %v58
    %232 = vmatprep.subr.mxu0 0.0
    %233 = vmatpush1.msra.mxu0 %v59
    %234 = vmatprep.subr.mxu0 0.0
    %235 = vmatpush1.msra.mxu0 %v60
    %236 = vmatprep.subr.mxu0 0.0
    %237 = vmatpush1.msra.mxu0 %v61
    %238 = vmatprep.subr.mxu0 0.0
    %239 = vmatpush1.msra.mxu0 %v62
    %240 = vmatprep.subr.mxu0 0.0
    %241 = vmatpush1.msra.mxu0 %v63
    %242 = vmatprep.subr.mxu0 0.0
    %243 = vmatpush1.msra.mxu0 %v64
    %244 = vmatprep.subr.mxu0 0.0
    %245 = vmatpush1.msra.mxu0 %v65
    %246 = vmatprep.subr.mxu0 0.0
    %247 = vmatpush1.msra.mxu0 %v66
    %248 = vmatprep.subr.mxu0 0.0
    %249 = vmatpush1.msra.mxu0 %v67
    %250 = vmatprep.subr.mxu0 0.0
    %251 = vmatpush1.msra.mxu0 %v68
    %252 = vmatprep.subr.mxu0 0.0
    %253 = vmatpush1.msra.mxu0 %v69
    %254 = vmatprep.subr.mxu0 0.0
    %255 = vmatpush1.msra.mxu0 %v70
    %256 = vmatprep.subr.mxu0 0.0
    %257 = vmatpush1.msra.mxu0 %v71
    %258 = vmatprep.subr.mxu0 0.0
    %259 = vmatpush1.msra.mxu0 %v72
    %260 = vmatprep.subr.mxu0 0.0
    %261 = vmatpush1.msra.mxu0 %v73
    %262 = vmatprep.subr.mxu0 0.0
    %263 = vmatpush1.msra.mxu0 %v74
    %264 = vmatprep.subr.mxu0 0.0
    %265 = vmatpush1.msra.mxu0 %v75
    %266 = vmatprep.subr.mxu0 0.0
    %267 = vmatpush1.msra.mxu0 %v76
    %268 = vmatprep.subr.mxu0 0.0
    %269 = vmatpush1.msra.mxu0 %v77
    %270 = vmatprep.subr.mxu0 0.0
    %271 = vmatpush1.msra.mxu0 %v78
    %272 = vmatprep.subr.mxu0 0.0
    %273 = vmatpush1.msra.mxu0 %v79
    %274 = vmatprep.subr.mxu0 0.0
    %275 = vmatpush1.msra.mxu0 %v80
    %276 = vmatprep.subr.mxu0 0.0
    %277 = vmatpush1.msra.mxu0 %v81
    %278 = vmatprep.subr.mxu0 0.0
    %279 = vmatpush1.msra.mxu0 %v82
    %280 = vmatprep.subr.mxu0 0.0
    %281 = vmatpush1.msra.mxu0 %v83
    %282 = vmatprep.mubr.f32.mxu0 %v15
    %283 = vmatmul.mubr.f32.gmra.mrb[0].mxu0 %v14
    %v284 = vpop.f32.mrb[0].mxu0
    %v285 = vadd.f32 %v215, %v284
    %v286 = vpop.f32.mrb[0].mxu0
    %287 = vdwg.mxu0
    %288 = vmatprep.subr.mxu0 0.0
    %289 = vmatpush1.msra.mxu0 %v84
    %290 = vmatprep.subr.mxu0 0.0
    %291 = vmatpush1.msra.mxu0 %v85
    %292 = vmatprep.subr.mxu0 0.0
    %293 = vmatpush1.msra.mxu0 %v86
    %294 = vmatprep.subr.mxu0 0.0
    %295 = vmatpush1.msra.mxu0 %v87
    %296 = vmatprep.subr.mxu0 0.0
    %297 = vmatpush1.msra.mxu0 %v88
    %298 = vmatprep.subr.mxu0 0.0
    %299 = vmatpush1.msra.mxu0 %v89
    %300 = vmatprep.subr.mxu0 0.0
    %301 = vmatpush1.msra.mxu0 %v90
    %302 = vmatprep.subr.mxu0 0.0
    %303 = vmatpush1.msra.mxu0 %v91
    %304 = vmatprep.subr.mxu0 0.0
    %305 = vmatpush1.msra.mxu0 %v92
    %306 = vmatprep.subr.mxu0 0.0
    %307 = vmatpush1.msra.mxu0 %v93
    %308 = vmatprep.subr.mxu0 0.0
    %309 = vmatpush1.msra.mxu0 %v94
    %310 = vmatprep.subr.mxu0 0.0
    %311 = vmatpush1.msra.mxu0 %v95
    %312 = vmatprep.subr.mxu0 0.0
    %313 = vmatpush1.msra.mxu0 %v96
    %314 = vmatprep.subr.mxu0 0.0
    %315 = vmatpush1.msra.mxu0 %v97
    %316 = vmatprep.subr.mxu0 0.0
    %317 = vmatpush1.msra.mxu0 %v98
    %318 = vmatprep.subr.mxu0 0.0
    %319 = vmatpush1.msra.mxu0 %v99
    %320 = vmatprep.subr.mxu0 0.0
    %321 = vmatpush1.msra.mxu0 %v100
    %322 = vmatprep.subr.mxu0 0.0
    %323 = vmatpush1.msra.mxu0 %v101
    %324 = vmatprep.subr.mxu0 0.0
    %325 = vmatpush1.msra.mxu0 %v102
    %326 = vmatprep.subr.mxu0 0.0
    %327 = vmatpush1.msra.mxu0 %v103
    %328 = vmatprep.subr.mxu0 0.0
    %329 = vmatpush1.msra.mxu0 %v104
    %330 = vmatprep.subr.mxu0 0.0
    %331 = vmatpush1.msra.mxu0 %v105
    %332 = vmatprep.subr.mxu0 0.0
    %333 = vmatpush1.msra.mxu0 %v106
    %334 = vmatprep.subr.mxu0 0.0
    %335 = vmatpush1.msra.mxu0 %v107
    %336 = vmatprep.subr.mxu0 0.0
    %337 = vmatpush1.msra.mxu0 %v108
    %338 = vmatprep.subr.mxu0 0.0
    %339 = vmatpush1.msra.mxu0 %v109
    %340 = vmatprep.subr.mxu0 0.0
    %341 = vmatpush1.msra.mxu0 %v110
    %342 = vmatprep.subr.mxu0 0.0
    %343 = vmatpush1.msra.mxu0 %v111
    %344 = vmatprep.subr.mxu0 0.0
    %345 = vmatpush1.msra.mxu0 %v112
    %346 = vmatprep.subr.mxu0 0.0
    %347 = vmatpush1.msra.mxu0 %v113
    %348 = vmatprep.subr.mxu0 0.0
    %349 = vmatpush1.msra.mxu0 %v114
    %350 = vmatprep.subr.mxu0 0.0
    %351 = vmatpush1.msra.mxu0 %v115
    %352 = vmatprep.mubr.f32.mxu0 %v17
    %353 = vmatmul.mubr.f32.gmra.mrb[0].mxu0 %v16
    %v354 = vpop.f32.mrb[0].mxu0
    %v355 = vadd.f32 %v285, %v354
    %v356 = vpop.f32.mrb[0].mxu0
    %357 = vdwg.mxu0
    %358 = vmatprep.subr.mxu0 0.0
    %359 = vmatpush1.msra.mxu0 %v116
    %360 = vmatprep.subr.mxu0 0.0
    %361 = vmatpush1.msra.mxu0 %v117
    %362 = vmatprep.subr.mxu0 0.0
    %363 = vmatpush1.msra.mxu0 %v118
    %364 = vmatprep.subr.mxu0 0.0
    %365 = vmatpush1.msra.mxu0 %v119
    %366 = vmatprep.subr.mxu0 0.0
    %367 = vmatpush1.msra.mxu0 %v120
    %368 = vmatprep.subr.mxu0 0.0
    %369 = vmatpush1.msra.mxu0 %v121
    %370 = vmatprep.subr.mxu0 0.0
    %371 = vmatpush1.msra.mxu0 %v122
    %372 = vmatprep.subr.mxu0 0.0
    %373 = vmatpush1.msra.mxu0 %v123
    %374 = vmatprep.subr.mxu0 0.0
    %375 = vmatpush1.msra.mxu0 %v124
    %376 = vmatprep.subr.mxu0 0.0
    %377 = vmatpush1.msra.mxu0 %v125
    %378 = vmatprep.subr.mxu0 0.0
    %379 = vmatpush1.msra.mxu0 %v126
    %380 = vmatprep.subr.mxu0 0.0
    %381 = vmatpush1.msra.mxu0 %v127
    %382 = vmatprep.subr.mxu0 0.0
    %383 = vmatpush1.msra.mxu0 %v128
    %384 = vmatprep.subr.mxu0 0.0
    %385 = vmatpush1.msra.mxu0 %v129
    %386 = vmatprep.subr.mxu0 0.0
    %387 = vmatpush1.msra.mxu0 %v130
    %388 = vmatprep.subr.mxu0 0.0
    %389 = vmatpush1.msra.mxu0 %v131
    %390 = vmatprep.subr.mxu0 0.0
    %391 = vmatpush1.msra.mxu0 %v132
    %392 = vmatprep.subr.mxu0 0.0
    %393 = vmatpush1.msra.mxu0 %v133
    %394 = vmatprep.subr.mxu0 0.0
    %395 = vmatpush1.msra.mxu0 %v134
    %396 = vmatprep.subr.mxu0 0.0
    %397 = vmatpush1.msra.mxu0 %v135
    %398 = vmatprep.subr.mxu0 0.0
    %399 = vmatpush1.msra.mxu0 %v136
    %400 = vmatprep.subr.mxu0 0.0
    %401 = vmatpush1.msra.mxu0 %v137
    %402 = vmatprep.subr.mxu0 0.0
    %403 = vmatpush1.msra.mxu0 %v138
    %404 = vmatprep.subr.mxu0 0.0
    %405 = vmatpush1.msra.mxu0 %v139
    %406 = vmatprep.subr.mxu0 0.0
    %407 = vmatpush1.msra.mxu0 %v140
    %408 = vmatprep.subr.mxu0 0.0
    %409 = vmatpush1.msra.mxu0 %v141
    %410 = vmatprep.subr.mxu0 0.0
    %411 = vmatpush1.msra.mxu0 %v142
    %412 = vmatprep.subr.mxu0 0.0
    %413 = vmatpush1.msra.mxu0 %v143
    %414 = vmatprep.subr.mxu0 0.0
    %415 = vmatpush1.msra.mxu0 %v144
    %416 = vmatprep.subr.mxu0 0.0
    %417 = vmatpush1.msra.mxu0 %v145
    %418 = vmatprep.subr.mxu0 0.0
    %419 = vmatpush1.msra.mxu0 %v146
    %420 = vmatprep.subr.mxu0 0.0
    %421 = vmatpush1.msra.mxu0 %v147
    %422 = vmatprep.mubr.f32.mxu0 %v19
    %423 = vmatmul.mubr.f32.gmra.mrb[0].mxu0 %v18
    %v424 = vpop.f32.mrb[0].mxu0
    %v425 = vadd.f32 %v355, %v424
    %v426 = vpop.f32.mrb[0].mxu0
    %427 = vdwg.mxu0
    %v428 = vmul.f32 %v425, 0.03125
    %vm429 = vcmask 80896
    %430 = vst.msk [vmem:[#allocation2] sm:$0xff] %vm429, %v428
    // Predicated region
    $region10: #{tpu_custom_call.1} parent=1 // pred_check
      _
    $region11: #{tpu_custom_call.1} parent=1 // pred_check_branch
      %432 = sbr.rel (0) target = $region13
    $region12: #{tpu_custom_call.1} parent=1 // pred_region
      %s434 = ssub.s32 128, 128
      %435 = vsyncadd [#allocation3], %s434
      %s437 = sshll.u32 [#allocation2], 4
      %s438 = int_to_ptr.vmem [resolvable:$true] %s437
      %440 = dma.vmem_to_hbm [thread:$0]  %s438, 128, %s2, [#allocation3]
    $region13: #{tpu_custom_call.1} parent=1 // pred_fallthru
      _
    // Predicated region
    $region14: #{tpu_custom_call.1} parent=1 // pred_check
      _
    $region15: #{tpu_custom_call.1} parent=1 // pred_check_branch
      %442 = sbr.rel (0) target = $region17
    $region16: #{tpu_custom_call.1} parent=1 // pred_region
      %443 = dma.done [#allocation3], 128
    $region17: #{tpu_custom_call.1} parent=1 // pred_fallthru
      _
    %444 = vsyncpa [#allocation3], 1

</llo_original>
